<compile_context>
chip_gen: v5e
topology: v5e:2x2
jax: 0.10.0
libtpu: 0.0.40
codegen_flags: <defaults>
</compile_context>

<pallas_src>
import jax
import jax.numpy as jnp
from jax.experimental import pallas as pl
from jax.experimental.pallas import tpu as pltpu


def _round_up(x, m):
    return ((x + m - 1) // m) * m


def itm_head_kernel(x_ref, w_ref, b_ref, o_ref):
    # (TM, d_in) @ (d_in, 128) on the MXU with f32 accumulation; bias add on the VPU.
    acc = jnp.dot(x_ref[...], w_ref[...], preferred_element_type=jnp.float32)
    acc = acc + b_ref[...]
    d_out = o_ref.shape[0]
    # Lane-dense transposed store: (TM, 128) -> (128, TM) via XLU (free slack here),
    # keep the first d_out sublanes -> (d_out, TM). Only d_out*TM values hit HBM.
    o_ref[...] = jnp.transpose(acc)[:d_out, :].astype(o_ref.dtype)


def _choose_tm(m, d_in, d_out_p, tm_max, vmem_budget_bytes):
    """Row-tile size from a VMEM budget (conservative f32 sizing, W double-buffered)."""
    itemsize = 4
    w_resident = 2 * d_in * d_out_p * itemsize       # assume compiler double-buffers W
    row_bytes = 2 * d_in * itemsize                  # double-buffered x tile, per row
    tm_budget = (vmem_budget_bytes - w_resident) // row_bytes
    tm_budget = max(128, (tm_budget // 128) * 128)
    tm_cap = max(128, min(tm_max, tm_budget))
    if m <= tm_cap:
        if m > 256:
            # >=2 grid steps so a 2-TC chip (v7x) shards rows across both cores.
            return min(tm_cap, _round_up(pl.cdiv(m, 2), 128))
        return m        # single block: block dims equal the full array dims (legal)
    return tm_cap


def prepare_itm_head_params(params, lane=128):
    """One-time prep: pad W (hidden, 2) -> (hidden, 128), b (2,) -> (1, 128)."""
    w, b = params["w"], params["b"]
    d_in, d_out = w.shape
    d_out_p = max(lane, _round_up(d_out, lane))
    w_p = jnp.zeros((d_in, d_out_p), w.dtype).at[:, :d_out].set(w)
    b_p = jnp.zeros((1, d_out_p), b.dtype).at[0, :d_out].set(b)
    return {"w_p": w_p, "b_p": b_p, "d_out": d_out}


def itm_head_forward(x, prepared, *, tm_max=1024, vmem_budget_bytes=28 * 1024 * 1024):
    """x: (..., hidden_size). prepared: output of prepare_itm_head_params."""
    w_p, b_p, d_out = prepared["w_p"], prepared["b_p"], prepared["d_out"]
    lead_shape = x.shape[:-1]
    d_in = x.shape[-1]
    d_out_p = w_p.shape[-1]

    m = 1
    for s in lead_shape:
        m *= s
    x2d = x.reshape(m, d_in)            # free bitcast-style reshape; NO padding pass

    tm_eff = _choose_tm(m, d_in, d_out_p, tm_max, vmem_budget_bytes)
    grid = (pl.cdiv(m, tm_eff),)        # ragged last block handled by Pallas

    x_item = jnp.dtype(x.dtype).itemsize
    w_item = jnp.dtype(w_p.dtype).itemsize
    cost = pl.CostEstimate(
        flops=2 * m * d_in * d_out_p,
        transcendentals=0,
        bytes_accessed=m * d_in * x_item + (d_in + 1) * d_out_p * w_item
        + d_out * m * x_item,
    )

    vmem_need = (
        2 * tm_eff * d_in * x_item          # double-buffered x tiles
        + 2 * d_in * d_out_p * w_item       # W (assume double-buffered)
        + 2 * d_out_p * w_item              # bias
        + 2 * d_out * tm_eff * x_item       # tiny transposed output blocks
        + (1 << 20)                         # headroom
    )
    vmem_limit = min(64 * 1024 * 1024, max(32 * 1024 * 1024, (vmem_need * 5) // 4))

    out_t = pl.pallas_call(
        itm_head_kernel,
        out_shape=jax.ShapeDtypeStruct((d_out, m), x.dtype),
        grid=grid,
        in_specs=[
            pl.BlockSpec((tm_eff, d_in), lambda i: (i, 0)),    # x row tile (pipelined)
            pl.BlockSpec((d_in, d_out_p), lambda i: (0, 0)),   # W resident across grid
            pl.BlockSpec((1, d_out_p), lambda i: (0, 0)),      # bias resident
        ],
        out_specs=pl.BlockSpec((d_out, tm_eff), lambda i: (0, i)),  # lane-dense on M
        compiler_params=pltpu.CompilerParams(
            dimension_semantics=("parallel",),   # megacore sharding on v7x
            vmem_limit_bytes=int(vmem_limit),
        ),
        cost_estimate=cost,
    )(x2d, w_p, b_p)

    return out_t.T.reshape(*lead_shape, d_out)   # cheap (2, M) -> (M, 2)


def init_itm_head_params(key, hidden_size, dtype=jnp.float32):
    kw, kb = jax.random.split(key)
    # Matches nn.Linear uniform(-1/sqrt(fan_in), 1/sqrt(fan_in)); W stored as (in, out).
    bound = 1.0 / (hidden_size ** 0.5)
    w = jax.random.uniform(kw, (hidden_size, 2), dtype, -bound, bound)
    b = jax.random.uniform(kb, (2,), dtype, -bound, bound)
    return {"w": w, "b": b}


def itm_head_reference(x, params):
    return jnp.dot(x, params["w"], precision=jax.lax.Precision.HIGHEST) + params["b"]


if __name__ == "__main__":
    key = jax.random.PRNGKey(0)
    k_x, k_p = jax.random.split(key)

    batch, seq, hidden_size = 2, 8, 128

    x = jax.random.normal(k_x, (batch, seq, hidden_size), jnp.float32)
    params = init_itm_head_params(k_p, hidden_size)
    prepared = prepare_itm_head_params(params)   # one-time padding, outside forward

    out = itm_head_forward(x, prepared)
    out = jax.block_until_ready(out)

    ref = itm_head_reference(x, params)
    assert out.shape == (batch, seq, 2)
    assert jnp.allclose(out, ref, atol=1e-4, rtol=1e-4)

    print("KERNEL_OK")
</pallas_src>

<mosaic_0001>
module attributes {stable_mosaic.version = 11 : i64} {
  func.func @itm_head_kernel(%arg0: i32, %arg1: memref<16x128xf32, #tpu.memory_space<vmem>>, %arg2: memref<128x128xf32, #tpu.memory_space<vmem>>, %arg3: memref<1x128xf32, #tpu.memory_space<vmem>>, %arg4: memref<2x16xf32, #tpu.memory_space<vmem>>) attributes {dimension_semantics = [#tpu.dimension_semantics<parallel>], iteration_bounds = array<i64: 1>, scalar_prefetch = 0 : i64, scratch_operands = 0 : i64, tpu.core_type = #tpu.core_type<tc>, window_params = [{transform_indices = @transform_0, window_bounds = array<i64: 16, 128>}, {pipeline_mode = #tpu.pipeline_mode<synchronous>, transform_indices = @transform_1, window_bounds = array<i64: 128, 128>}, {pipeline_mode = #tpu.pipeline_mode<synchronous>, transform_indices = @transform_2, window_bounds = array<i64: 1, 128>}, {transform_indices = @transform_3, window_bounds = array<i64: 2, 16>}]} {
    %c0 = arith.constant 0 : index
    %c0_0 = arith.constant 0 : index
    %0 = vector.load %arg1[%c0, %c0_0] : memref<16x128xf32, #tpu.memory_space<vmem>>, vector<16x128xf32>
    %c0_1 = arith.constant 0 : index
    %c0_2 = arith.constant 0 : index
    %1 = vector.load %arg2[%c0_1, %c0_2] : memref<128x128xf32, #tpu.memory_space<vmem>>, vector<128x128xf32>
    %cst = arith.constant dense<0.000000e+00> : vector<16x128xf32>
    %2 = tpu.matmul %0, %1, %cst {dimension_numbers = #tpu.dot_dimension_numbers<[1], [0], [0], [1], [0, 0, 1, 1], [], []>} : vector<16x128xf32>, vector<128x128xf32>, vector<16x128xf32> -> vector<16x128xf32>
    %c0_3 = arith.constant 0 : index
    %c0_4 = arith.constant 0 : index
    %3 = vector.load %arg3[%c0_3, %c0_4] : memref<1x128xf32, #tpu.memory_space<vmem>>, vector<1x128xf32>
    %4 = vector.broadcast %3 : vector<1x128xf32> to vector<16x128xf32>
    %5 = arith.addf %2, %4 : vector<16x128xf32>
    %6 = tpu.transpose %5, [1, 0] : vector<16x128xf32> -> vector<128x16xf32>
    %7 = vector.extract_strided_slice %6 {offsets = [0, 0], sizes = [2, 16], strides = [1, 1]} : vector<128x16xf32> to vector<2x16xf32>
    %c0_5 = arith.constant 0 : index
    %c0_6 = arith.constant 0 : index
    %8 = vector.load %arg4[%c0_5, %c0_6] : memref<2x16xf32, #tpu.memory_space<vmem>>, vector<2x16xf32>
    tpu.vector_store %arg4[%c0_5, %c0_6], %7 {strides = array<i32>} : memref<2x16xf32, #tpu.memory_space<vmem>>, vector<2x16xf32>,
    return
  }
  func.func @transform_0(%arg0: i32) -> (i32, i32) {
    %c0_i32 = arith.constant 0 : i32
    %c0_i32_0 = arith.constant 0 : i32
    return %arg0, %c0_i32 : i32, i32
  }
  func.func @transform_1(%arg0: i32) -> (i32, i32) {
    %c0_i32 = arith.constant 0 : i32
    %c0_i32_0 = arith.constant 0 : i32
    %c0_i32_1 = arith.constant 0 : i32
    return %c0_i32, %c0_i32_0 : i32, i32
  }
  func.func @transform_2(%arg0: i32) -> (i32, i32) {
    %c0_i32 = arith.constant 0 : i32
    %c0_i32_0 = arith.constant 0 : i32
    %c0_i32_1 = arith.constant 0 : i32
    return %c0_i32, %c0_i32_0 : i32, i32
  }
  func.func @transform_3(%arg0: i32) -> (i32, i32) {
    %c0_i32 = arith.constant 0 : i32
    %c0_i32_0 = arith.constant 0 : i32
    return %c0_i32, %arg0 : i32, i32
  }
}

</mosaic_0001>

<llo_original>
// kernel: tpu_custom_call.1
$region0: #{tpu_custom_call.1}
  #allocation0 [shape = 'u32[]', space=smem, size = 0x4, offset = 0x4, fixed_abs, tag = 'smem constant byte address 0x4 - core index']
  #allocation1 [shape = 'u32[72,128]{1,0:T(1,128)}', space=vmem, size = 0x9000, scoped, tag = 'internal scratch']
  %s0 = inlined_call_operand.hbm [shape: f32[16,128], index: 0, kind: input, shape index: {}]
  %s1 = inlined_call_operand.hbm [shape: f32[128,128], index: 1, kind: input, shape index: {}]
  %s2 = inlined_call_operand.vmem [shape: f32[1,128], index: 2, kind: input, shape index: {}]
  %s3 = inlined_call_operand.hbm [shape: f32[2,16], index: 3, kind: output, shape index: {}]
  %s4 = sld [smem:[#allocation0]]
  $region30: #{tpu_custom_call.1} parent=0
    _
  %s6 = ssub.s32 1, %s4
  %s7 = scalar_select 0, %s6, %s4
  $region1: #{tpu_custom_call.1} parent=0
    #allocation2 [shape = 'u8[8192]{0}', space=vmem, size = 0x2000, scoped, tag = 'input window, operand 0, single buffered']
    #allocation3 [shape = 's32[1]{0}', space=sflag, size = 0x4, scoped, tag = 'scoped memory for tpu_custom_call.1']
    #allocation4 [shape = 's32[1]{0}', space=sflag, size = 0x4, scoped, tag = 'scoped memory for tpu_custom_call.1']
    #allocation5 [shape = 'u8[65536]{0}', space=vmem, size = 0x10000, scoped, tag = 'input window, operand 1, single buffered']
    #allocation6 [shape = 's32[1]{0}', space=sflag, size = 0x4, scoped, tag = 'scoped memory for tpu_custom_call.1']
    #allocation7 [shape = 'u8[1024]{0}', space=vmem, size = 0x400, scoped, tag = 'output window, operand 0, single buffered']
    %8 = vsyncpa [#allocation3], 0
    %9 = vsyncpa [#allocation6], 0
    %10 = vsyncpa [#allocation4], 0
    // Predicated region
    $region2: #{tpu_custom_call.1} parent=1 // pred_check
      _
    $region3: #{tpu_custom_call.1} parent=1 // pred_check_branch
      %12 = sbr.rel (0) target = $region5
    $region4: #{tpu_custom_call.1} parent=1 // pred_region
      %14 = vsyncadd [#allocation3], 0
      %s15 = sshll.u32 %s0, 4
      %s16 = int_to_ptr.hbm [resolvable:$true] %s15
      %s17 = sshll.u32 [#allocation2], 4
      %s18 = int_to_ptr.vmem [resolvable:$true] %s17
      %23 = dma.hbm_to_vmem [thread:$0]  %s16, 256, %s18, [#allocation3], 128, 128, 8
    $region5: #{tpu_custom_call.1} parent=1 // pred_fallthru
      _
    // Predicated region
    $region6: #{tpu_custom_call.1} parent=1 // pred_check
      _
    $region7: #{tpu_custom_call.1} parent=1 // pred_check_branch
      %25 = sbr.rel (0) target = $region9
    $region8: #{tpu_custom_call.1} parent=1 // pred_region
      %27 = vsyncadd [#allocation6], 0
      %s28 = sshll.u32 %s1, 4
      %s29 = int_to_ptr.hbm [resolvable:$true] %s28
      %s30 = sshll.u32 [#allocation5], 4
      %s31 = int_to_ptr.vmem [resolvable:$true] %s30
      %36 = dma.hbm_to_vmem [thread:$0]  %s29, 2048, %s31, [#allocation6], 128, 128, 8
    $region9: #{tpu_custom_call.1} parent=1 // pred_fallthru
      _
    // Predicated region
    $region10: #{tpu_custom_call.1} parent=1 // pred_check
      _
    $region11: #{tpu_custom_call.1} parent=1 // pred_check_branch
      %38 = sbr.rel (0) target = $region13
    $region12: #{tpu_custom_call.1} parent=1 // pred_region
      _
    $region13: #{tpu_custom_call.1} parent=1 // pred_fallthru
      _
    // Predicated region
    $region14: #{tpu_custom_call.1} parent=1 // pred_check
      _
    $region15: #{tpu_custom_call.1} parent=1 // pred_check_branch
      %40 = sbr.rel (0) target = $region17
    $region16: #{tpu_custom_call.1} parent=1 // pred_region
      %42 = dma.done [#allocation3], 256
    $region17: #{tpu_custom_call.1} parent=1 // pred_fallthru
      _
    // Predicated region
    $region18: #{tpu_custom_call.1} parent=1 // pred_check
      _
    $region19: #{tpu_custom_call.1} parent=1 // pred_check_branch
      %44 = sbr.rel (0) target = $region21
    $region20: #{tpu_custom_call.1} parent=1 // pred_region
      %46 = dma.done [#allocation6], 2048
    $region21: #{tpu_custom_call.1} parent=1 // pred_fallthru
      _
    %v47 = vld [vmem:[#allocation2] sm:$0xff]
    %v48 = vld [vmem:[#allocation2 + $0x8] sm:$0xff]
    %v49 = vld [vmem:[#allocation5] sm:$0xff]
    %v50 = vld [vmem:[#allocation5 + $0x8] sm:$0xff]
    %v51 = vld [vmem:[#allocation5 + $0x10] sm:$0xff]
    %v52 = vld [vmem:[#allocation5 + $0x18] sm:$0xff]
    %v53 = vld [vmem:[#allocation5 + $0x20] sm:$0xff]
    %v54 = vld [vmem:[#allocation5 + $0x28] sm:$0xff]
    %v55 = vld [vmem:[#allocation5 + $0x30] sm:$0xff]
    %v56 = vld [vmem:[#allocation5 + $0x38] sm:$0xff]
    %v57 = vld [vmem:[#allocation5 + $0x40] sm:$0xff]
    %v58 = vld [vmem:[#allocation5 + $0x48] sm:$0xff]
    %v59 = vld [vmem:[#allocation5 + $0x50] sm:$0xff]
    %v60 = vld [vmem:[#allocation5 + $0x58] sm:$0xff]
    %v61 = vld [vmem:[#allocation5 + $0x60] sm:$0xff]
    %v62 = vld [vmem:[#allocation5 + $0x68] sm:$0xff]
    %v63 = vld [vmem:[#allocation5 + $0x70] sm:$0xff]
    %v64 = vld [vmem:[#allocation5 + $0x78] sm:$0xff]
    %v65 = vld [vmem:[%s2] sm:$0x1]
    %v67 = vperm.slane %v65, 0
    %69 = vmatpush.msra.mxu0 %v64
    %70 = vmatpush.msra.mxu0 %v63
    %71 = vmatpush.msra.mxu0 %v62
    %72 = vmatpush.msra.mxu0 %v61
    %73 = vmatpush.msra.mxu0 %v60
    %74 = vmatpush.msra.mxu0 %v59
    %75 = vmatpush.msra.mxu0 %v58
    %76 = vmatpush.msra.mxu0 %v57
    %77 = vmatpush.msra.mxu0 %v56
    %78 = vmatpush.msra.mxu0 %v55
    %79 = vmatpush.msra.mxu0 %v54
    %80 = vmatpush.msra.mxu0 %v53
    %81 = vmatpush.msra.mxu0 %v52
    %82 = vmatpush.msra.mxu0 %v51
    %83 = vmatpush.msra.mxu0 %v50
    %84 = vmatpush.msra.mxu0 %v49
    %85 = vmatmul.f32.gmra.mxu0 %v47
    %v86 = vpop.f32.mrf.mxu0
    %v87 = vadd.f32 %v67, %v86
    %88 = vmatmul.f32.gmra.mxu0 %v48
    %v89 = vpop.f32.mrf.mxu0
    %v90 = vadd.f32 %v67, %v89
    %91 = vdwg.mxu0
    %92 = vxpose.xlu0.b32.start [1/16] %v87, 128
    %93 = vxpose.xlu0.b32.cont [2/16] %v90, 128
    %94 = vxpose.xlu0.b32.cont [3/16] 0.0, 128
    %95 = vxpose.xlu0.b32.cont [4/16] 0.0, 128
    %96 = vxpose.xlu0.b32.cont [5/16] 0.0, 128
    %97 = vxpose.xlu0.b32.cont [6/16] 0.0, 128
    %98 = vxpose.xlu0.b32.cont [7/16] 0.0, 128
    %99 = vxpose.xlu0.b32.cont [8/16] 0.0, 128
    %100 = vxpose.xlu0.b32.cont [9/16] 0.0, 128
    %101 = vxpose.xlu0.b32.cont [10/16] 0.0, 128
    %102 = vxpose.xlu0.b32.cont [11/16] 0.0, 128
    %103 = vxpose.xlu0.b32.cont [12/16] 0.0, 128
    %104 = vxpose.xlu0.b32.cont [13/16] 0.0, 128
    %105 = vxpose.xlu0.b32.cont [14/16] 0.0, 128
    %106 = vxpose.xlu0.b32.cont [15/16] 0.0, 128
    %107 = vxpose.xlu0.b32.end [16/16] 0.0, 128
    %v108 = vpop.trf.xlu0
    %v109 = vpop.trf.xlu0
    %v110 = vpop.trf.xlu0
    %v111 = vpop.trf.xlu0
    %v112 = vpop.trf.xlu0
    %v113 = vpop.trf.xlu0
    %v114 = vpop.trf.xlu0
    %v115 = vpop.trf.xlu0
    %v116 = vpop.trf.xlu0
    %v117 = vpop.trf.xlu0
    %v118 = vpop.trf.xlu0
    %v119 = vpop.trf.xlu0
    %v120 = vpop.trf.xlu0
    %v121 = vpop.trf.xlu0
    %v122 = vpop.trf.xlu0
    %v123 = vpop.trf.xlu0
    %vm124 = vcmask 123904
    %125 = vst.msk [vmem:[#allocation7] sm:$0x3] %vm124, %v108
    // Predicated region
    $region22: #{tpu_custom_call.1} parent=1 // pred_check
      _
    $region23: #{tpu_custom_call.1} parent=1 // pred_check_branch
      %127 = sbr.rel (0) target = $region25
    $region24: #{tpu_custom_call.1} parent=1 // pred_region
      %129 = vsyncadd [#allocation4], 0
      %s131 = sshll.u32 [#allocation7], 4
      %s132 = int_to_ptr.vmem [resolvable:$true] %s131
      %s133 = sshll.u32 %s3, 4
      %s134 = int_to_ptr.hbm [resolvable:$true] %s133
      %136 = dma.vmem_to_hbm [thread:$0]  %s132, 32, %s134, [#allocation4]
    $region25: #{tpu_custom_call.1} parent=1 // pred_fallthru
      _
    // Predicated region
    $region26: #{tpu_custom_call.1} parent=1 // pred_check
      _
    $region27: #{tpu_custom_call.1} parent=1 // pred_check_branch
      %138 = sbr.rel (0) target = $region29
    $region28: #{tpu_custom_call.1} parent=1 // pred_region
      %140 = dma.done [#allocation4], 32
    $region29: #{tpu_custom_call.1} parent=1 // pred_fallthru
      _
    %141 = vsyncpa [#allocation3], 1
    %142 = vsyncpa [#allocation6], 1
    %143 = vsyncpa [#allocation4], 1

</llo_original>
